<compile_context>
chip_gen: v7x
topology: tpu7x:2x2x1
jax: 0.10.0
libtpu: 0.0.40
codegen_flags: <defaults>
</compile_context>

<pallas_src>
import jax
import jax.numpy as jnp
from jax.experimental import pallas as pl
from jax.experimental.pallas import tpu as pltpu

EPS = 1e-5

# Conservative per-kernel VMEM budget for the pipelined blocks: fits inside the
# default scoped-VMEM limit on every generation (v5e 16 MiB is the smallest).
_VMEM_BUDGET_BYTES = 12 * 1024 * 1024
_MAX_FEATURE_TILE = 2048  # lanes; beyond this, DMA is already well amortized


def _embedding_bn_kernel(x_ref, o_ref):
    """Fused training-mode BatchNorm1d (affine=False) over the batch axis.

    Block is (N, F_TILE): full batch, a lane-dense slice of features.
    x is loaded once into vregs; mean / var are XLU reductions on the
    already-resident data, rsqrt goes to the EUP slot.
    """
    x = x_ref[...].astype(jnp.float32)
    mean = jnp.mean(x, axis=0, keepdims=True)
    centered = x - mean
    var = jnp.mean(centered * centered, axis=0, keepdims=True)  # biased var (BN)
    inv_std = jax.lax.rsqrt(var + EPS)
    # Scaling(method=None) is the identity, so BN output is the embedding.
    o_ref[...] = (centered * inv_std).astype(o_ref.dtype)


def _pick_feature_tile(n: int, f: int, in_itemsize: int, out_itemsize: int) -> int:
    """Largest lane-dense (multiple-of-128) feature tile that

      * divides F,
      * keeps double-buffered input + output blocks within the VMEM budget.

    If F is not a multiple of 128, fall back to a single full-width block
    (block_shape == full array bypasses the (8,128) divisibility constraint).
    """
    if f % 128 != 0:
        return f

    # Double-buffered input block + double-buffered output block per lane.
    bytes_per_lane = 2 * n * in_itemsize + 2 * n * out_itemsize
    tile = _VMEM_BUDGET_BYTES // max(bytes_per_lane, 1)
    tile = (tile // 128) * 128
    tile = max(128, min(tile, _MAX_FEATURE_TILE, f))
    # Shrink (in 128-lane steps) until the tile divides F exactly.
    while f % tile != 0:
        tile -= 128
    return tile


def embedding_forward(x: jax.Array) -> jax.Array:
    """Pallas wrapper: feature-tiled, DMA-pipelined batch normalization.

    Note: for tiny inputs (a few KiB) the fixed pallas_call overhead dominates
    and `embedding_forward_ref` is just as good; this wrapper always takes the
    Pallas path so the kernel is exercised.
    """
    n, f = x.shape
    f_tile = _pick_feature_tile(n, f, x.dtype.itemsize, x.dtype.itemsize)
    num_tiles = f // f_tile

    return pl.pallas_call(
        _embedding_bn_kernel,
        out_shape=jax.ShapeDtypeStruct((n, f), x.dtype),
        grid=(num_tiles,),
        in_specs=[pl.BlockSpec((n, f_tile), lambda j: (0, j))],
        out_specs=pl.BlockSpec((n, f_tile), lambda j: (0, j)),
        compiler_params=pltpu.CompilerParams(
            # Feature tiles are independent -> shard across v7x's two
            # TensorCores; harmless on single-TC v5e/v6e.
            dimension_semantics=("parallel",),
        ),
    )(x)


def embedding_forward_ref(x: jax.Array) -> jax.Array:
    """Pure-JAX reference (mirrors torch BatchNorm1d training mode, affine=False)."""
    x32 = x.astype(jnp.float32)
    mean = jnp.mean(x32, axis=0, keepdims=True)
    var = jnp.mean((x32 - mean) ** 2, axis=0, keepdims=True)
    return ((x32 - mean) * jax.lax.rsqrt(var + EPS)).astype(x.dtype)


if __name__ == "__main__":
    key = jax.random.PRNGKey(0)

    # --- main check: lane-dense tiled path (F multiple of 128) -------------
    BATCH = 16          # batch of embeddings
    N_FEATURES = 512    # Embedding.n_features (== Embedding.dimension)
    x = jax.random.normal(key, (BATCH, N_FEATURES), dtype=jnp.float32)

    out = embedding_forward(x)
    out = jax.block_until_ready(out)

    ref = embedding_forward_ref(x)
    assert out.shape == (BATCH, N_FEATURES)
    assert out.dtype == x.dtype
    assert jnp.allclose(out, ref, atol=1e-5, rtol=1e-5), "mismatch vs reference"

    # --- secondary check: F not a multiple of 128 -> single-block fallback --
    x2 = jax.random.normal(jax.random.PRNGKey(1), (8, 100), dtype=jnp.float32)
    out2 = jax.block_until_ready(embedding_forward(x2))
    ref2 = embedding_forward_ref(x2)
    assert jnp.allclose(out2, ref2, atol=1e-5, rtol=1e-5), "mismatch (fallback path)"

    print("KERNEL_OK")
</pallas_src>

<mosaic_0001>
module attributes {stable_mosaic.version = 11 : i64} {
  func.func @_embedding_bn_kernel(%arg0: i32, %arg1: memref<16x512xf32, #tpu.memory_space<vmem>>, %arg2: memref<16x512xf32, #tpu.memory_space<vmem>>) attributes {dimension_semantics = [#tpu.dimension_semantics<parallel>], iteration_bounds = array<i64: 1>, scalar_prefetch = 0 : i64, scratch_operands = 0 : i64, tpu.core_type = #tpu.core_type<tc>, window_params = [{transform_indices = @transform_0, window_bounds = array<i64: 16, 512>}, {transform_indices = @transform_1, window_bounds = array<i64: 16, 512>}]} {
    %c0 = arith.constant 0 : index
    %c0_0 = arith.constant 0 : index
    %0 = vector.load %arg1[%c0, %c0_0] : memref<16x512xf32, #tpu.memory_space<vmem>>, vector<16x512xf32>
    %cst = arith.constant dense<0.000000e+00> : vector<512xf32>
    %1 = vector.multi_reduction <add>, %0, %cst [0] : vector<16x512xf32> to vector<512xf32>
    %2 = vector.shape_cast %1 : vector<512xf32> to vector<1x512xf32>
    %cst_1 = arith.constant 1.600000e+01 : f32
    %3 = vector.broadcast %cst_1 : f32 to vector<1x512xf32>
    %4 = arith.divf %2, %3 : vector<1x512xf32>
    %5 = vector.broadcast %4 : vector<1x512xf32> to vector<16x512xf32>
    %6 = arith.subf %0, %5 : vector<16x512xf32>
    %7 = arith.mulf %6, %6 : vector<16x512xf32>
    %cst_2 = arith.constant dense<0.000000e+00> : vector<512xf32>
    %8 = vector.multi_reduction <add>, %7, %cst_2 [0] : vector<16x512xf32> to vector<512xf32>
    %9 = vector.shape_cast %8 : vector<512xf32> to vector<1x512xf32>
    %cst_3 = arith.constant 1.600000e+01 : f32
    %10 = vector.broadcast %cst_3 : f32 to vector<1x512xf32>
    %11 = arith.divf %9, %10 : vector<1x512xf32>
    %cst_4 = arith.constant 9.99999974E-6 : f32
    %12 = vector.broadcast %cst_4 : f32 to vector<1x512xf32>
    %13 = arith.addf %11, %12 : vector<1x512xf32>
    %14 = math.rsqrt %13 : vector<1x512xf32>
    %15 = vector.broadcast %14 : vector<1x512xf32> to vector<16x512xf32>
    %16 = arith.mulf %6, %15 : vector<16x512xf32>
    %c0_5 = arith.constant 0 : index
    %c0_6 = arith.constant 0 : index
    %17 = vector.load %arg2[%c0_5, %c0_6] : memref<16x512xf32, #tpu.memory_space<vmem>>, vector<16x512xf32>
    tpu.vector_store %arg2[%c0_5, %c0_6], %16 {strides = array<i32>} : memref<16x512xf32, #tpu.memory_space<vmem>>, vector<16x512xf32>,
    return
  }
  func.func @transform_0(%arg0: i32) -> (i32, i32) {
    %c0_i32 = arith.constant 0 : i32
    %c0_i32_0 = arith.constant 0 : i32
    return %c0_i32, %arg0 : i32, i32
  }
  func.func @transform_1(%arg0: i32) -> (i32, i32) {
    %c0_i32 = arith.constant 0 : i32
    %c0_i32_0 = arith.constant 0 : i32
    return %c0_i32, %arg0 : i32, i32
  }
}

</mosaic_0001>

<llo_original>
// kernel: tpu_custom_call.1
$region0: #{tpu_custom_call.1}
  #allocation0 [shape = 'u32[]', space=smem, size = 0x4, offset = 0x4, fixed_abs, tag = 'smem constant byte address 0x4 - core index']
  #allocation1 [shape = 'u32[144,128]{1,0:T(1,128)}', space=vmem, size = 0x12000, scoped, tag = 'internal scratch']
  %s0 = inlined_call_operand.hbm [shape: f32[16,512], index: 0, kind: input, shape index: {}]
  %s1 = inlined_call_operand.hbm [shape: f32[16,512], index: 1, kind: output, shape index: {}]
  %s2 = sld [smem:[#allocation0]]
  $region18: #{tpu_custom_call.1} parent=0
    _
  %s4 = ssub.s32 1, %s2
  %s5 = scalar_select 0, %s4, %s2
  $region1: #{tpu_custom_call.1} parent=0
    #allocation2 [shape = 'u8[32768]{0}', space=vmem, size = 0x8000, scoped, tag = 'input window, operand 0, single buffered']
    #allocation3 [shape = 's32[1]{0}', space=sflag, size = 0x4, scoped, tag = 'scoped memory for tpu_custom_call.1']
    #allocation4 [shape = 's32[1]{0}', space=sflag, size = 0x4, scoped, tag = 'scoped memory for tpu_custom_call.1']
    #allocation5 [shape = 'u8[32768]{0}', space=vmem, size = 0x8000, scoped, tag = 'output window, operand 0, single buffered']
    %6 = vsyncpa [#allocation3], 0
    %7 = vsyncpa [#allocation4], 0
    // Predicated region
    $region2: #{tpu_custom_call.1} parent=1 // pred_check
      _
    $region3: #{tpu_custom_call.1} parent=1 // pred_check_branch
      %9 = sbr.rel (0) target = $region5
    $region4: #{tpu_custom_call.1} parent=1 // pred_region
      %s11 = ssub.s32 1024, 1024
      %12 = vsyncadd [#allocation3], %s11
      %s13 = sshll.u32 [#allocation2], 4
      %s14 = int_to_ptr.vmem [resolvable:$true] %s13
      %19 = dma.hbm_to_vmem [thread:$0]  %s0, 1024, %s14, [#allocation3], 512, 512, 32
    $region5: #{tpu_custom_call.1} parent=1 // pred_fallthru
      _
    // Predicated region
    $region6: #{tpu_custom_call.1} parent=1 // pred_check
      _
    $region7: #{tpu_custom_call.1} parent=1 // pred_check_branch
      %21 = sbr.rel (0) target = $region9
    $region8: #{tpu_custom_call.1} parent=1 // pred_region
      %22 = dma.done [#allocation3], 1024
    $region9: #{tpu_custom_call.1} parent=1 // pred_fallthru
      _
    %v23 = vld [vmem:[#allocation2] sm:$0xff]
    %v24 = vld [vmem:[#allocation2 + $0x8] sm:$0xff]
    %v25 = vld [vmem:[#allocation2 + $0x10] sm:$0xff]
    %v26 = vld [vmem:[#allocation2 + $0x18] sm:$0xff]
    %v27 = vld [vmem:[#allocation2 + $0x20] sm:$0xff]
    %v28 = vld [vmem:[#allocation2 + $0x28] sm:$0xff]
    %v29 = vld [vmem:[#allocation2 + $0x30] sm:$0xff]
    %v30 = vld [vmem:[#allocation2 + $0x38] sm:$0xff]
    %v31 = vadd.f32 %v23, %v27
    %v32 = vrot.slane %v31, 4
    %v33 = vadd.f32 %v31, %v32
    %v34 = vrot.slane %v33, 2
    %v35 = vadd.f32 %v33, %v34
    %v36 = vrot.slane %v35, 1
    %v37 = vadd.f32 %v35, %v36
    %v38 = vadd.f32 %v24, %v28
    %v39 = vrot.slane %v38, 4
    %v40 = vadd.f32 %v38, %v39
    %v41 = vrot.slane %v40, 2
    %v42 = vadd.f32 %v40, %v41
    %v43 = vrot.slane %v42, 1
    %v44 = vadd.f32 %v42, %v43
    %v45 = vadd.f32 %v25, %v29
    %v46 = vrot.slane %v45, 4
    %v47 = vadd.f32 %v45, %v46
    %v48 = vrot.slane %v47, 2
    %v49 = vadd.f32 %v47, %v48
    %v50 = vrot.slane %v49, 1
    %v51 = vadd.f32 %v49, %v50
    %v52 = vadd.f32 %v26, %v30
    %v53 = vrot.slane %v52, 4
    %v54 = vadd.f32 %v52, %v53
    %v55 = vrot.slane %v54, 2
    %v56 = vadd.f32 %v54, %v55
    %v57 = vrot.slane %v56, 1
    %v58 = vadd.f32 %v56, %v57
    %v59 = vrcp.pop 16.0
    %v60 = vmul.f32 %v37, %v59
    %v61 = vmul.f32 %v44, %v59
    %v62 = vmul.f32 %v51, %v59
    %v63 = vmul.f32 %v58, %v59
    %v64 = vsub.f32 %v23, %v60
    %v65 = vsub.f32 %v24, %v61
    %v66 = vsub.f32 %v25, %v62
    %v67 = vsub.f32 %v26, %v63
    %v68 = vsub.f32 %v27, %v60
    %v69 = vsub.f32 %v28, %v61
    %v70 = vsub.f32 %v29, %v62
    %v71 = vsub.f32 %v30, %v63
    %v72 = vmul.f32 %v64, %v64
    %v73 = vmul.f32 %v65, %v65
    %v74 = vmul.f32 %v66, %v66
    %v75 = vmul.f32 %v67, %v67
    %v76 = vmul.f32 %v68, %v68
    %v77 = vmul.f32 %v69, %v69
    %v78 = vmul.f32 %v70, %v70
    %v79 = vmul.f32 %v71, %v71
    %v80 = vadd.f32 %v72, %v76
    %v81 = vrot.slane %v80, 4
    %v82 = vadd.f32 %v80, %v81
    %v83 = vrot.slane %v82, 2
    %v84 = vadd.f32 %v82, %v83
    %v85 = vrot.slane %v84, 1
    %v86 = vadd.f32 %v84, %v85
    %v87 = vadd.f32 %v73, %v77
    %v88 = vrot.slane %v87, 4
    %v89 = vadd.f32 %v87, %v88
    %v90 = vrot.slane %v89, 2
    %v91 = vadd.f32 %v89, %v90
    %v92 = vrot.slane %v91, 1
    %v93 = vadd.f32 %v91, %v92
    %v94 = vadd.f32 %v74, %v78
    %v95 = vrot.slane %v94, 4
    %v96 = vadd.f32 %v94, %v95
    %v97 = vrot.slane %v96, 2
    %v98 = vadd.f32 %v96, %v97
    %v99 = vrot.slane %v98, 1
    %v100 = vadd.f32 %v98, %v99
    %v101 = vadd.f32 %v75, %v79
    %v102 = vrot.slane %v101, 4
    %v103 = vadd.f32 %v101, %v102
    %v104 = vrot.slane %v103, 2
    %v105 = vadd.f32 %v103, %v104
    %v106 = vrot.slane %v105, 1
    %v107 = vadd.f32 %v105, %v106
    %v108 = vmul.f32 %v86, %v59
    %v109 = vmul.f32 %v93, %v59
    %v110 = vmul.f32 %v100, %v59
    %v111 = vmul.f32 %v107, %v59
    %v112 = vadd.f32 %v108, 1e-05
    %v113 = vadd.f32 %v109, 1e-05
    %v114 = vadd.f32 %v110, 1e-05
    %v115 = vadd.f32 %v111, 1e-05
    %v116 = vrsqrt.pop %v112
    %v117 = vrsqrt.pop %v113
    %v118 = vrsqrt.pop %v114
    %v119 = vrsqrt.pop %v115
    %v120 = vmul.f32 %v64, %v116
    %v121 = vmul.f32 %v65, %v117
    %v122 = vmul.f32 %v66, %v118
    %v123 = vmul.f32 %v67, %v119
    %v124 = vmul.f32 %v68, %v116
    %v125 = vmul.f32 %v69, %v117
    %v126 = vmul.f32 %v70, %v118
    %v127 = vmul.f32 %v71, %v119
    %128 = vst [vmem:[#allocation5] sm:$0xff] %v120
    %129 = vst [vmem:[#allocation5 + $0x8] sm:$0xff] %v121
    %130 = vst [vmem:[#allocation5 + $0x10] sm:$0xff] %v122
    %131 = vst [vmem:[#allocation5 + $0x18] sm:$0xff] %v123
    %132 = vst [vmem:[#allocation5 + $0x20] sm:$0xff] %v124
    %133 = vst [vmem:[#allocation5 + $0x28] sm:$0xff] %v125
    %134 = vst [vmem:[#allocation5 + $0x30] sm:$0xff] %v126
    %135 = vst [vmem:[#allocation5 + $0x38] sm:$0xff] %v127
    // Predicated region
    $region10: #{tpu_custom_call.1} parent=1 // pred_check
      _
    $region11: #{tpu_custom_call.1} parent=1 // pred_check_branch
      %137 = sbr.rel (0) target = $region13
    $region12: #{tpu_custom_call.1} parent=1 // pred_region
      %s139 = ssub.s32 1024, 1024
      %140 = vsyncadd [#allocation4], %s139
      %s141 = sshll.u32 [#allocation5], 4
      %s142 = int_to_ptr.vmem [resolvable:$true] %s141
      %147 = dma.vmem_to_hbm [thread:$0]  %s142, 1024, %s1, [#allocation4], 512, 512, 32
    $region13: #{tpu_custom_call.1} parent=1 // pred_fallthru
      _
    // Predicated region
    $region14: #{tpu_custom_call.1} parent=1 // pred_check
      _
    $region15: #{tpu_custom_call.1} parent=1 // pred_check_branch
      %149 = sbr.rel (0) target = $region17
    $region16: #{tpu_custom_call.1} parent=1 // pred_region
      %150 = dma.done [#allocation4], 1024
    $region17: #{tpu_custom_call.1} parent=1 // pred_fallthru
      _
    %151 = vsyncpa [#allocation3], 1
    %152 = vsyncpa [#allocation4], 1

</llo_original>
